<compile_context>
chip_gen: v7x
topology: tpu7x:2x2x1
jax: 0.10.0
libtpu: 0.0.40
codegen_flags: <defaults>
</compile_context>

<pallas_src>
import math
import functools

import jax
import jax.numpy as jnp
from jax import lax
from jax.experimental import pallas as pl
from jax.experimental.pallas import tpu as pltpu


# ---------------------------------------------------------------------------
# Stage 1: tiled linear  y = x @ W + b   (bf16 out, f32 accumulate)
# ---------------------------------------------------------------------------
def _linear_kernel(x_ref, w_ref, b_ref, o_ref):
    y = jnp.dot(x_ref[0], w_ref[...], preferred_element_type=jnp.float32)
    o_ref[0] = (y + b_ref[...]).astype(o_ref.dtype)


def _linear(x, w, b, *, row_tile, col_tile, out_dtype):
    """x: (B, S, Din) bf16, w: (Din, Dout) bf16, b: (1, Dout) f32."""
    B, S, Din = x.shape
    Dout = w.shape[1]
    return pl.pallas_call(
        _linear_kernel,
        out_shape=jax.ShapeDtypeStruct((B, S, Dout), out_dtype),
        grid_spec=pltpu.PrefetchScalarGridSpec(
            num_scalar_prefetch=0,
            grid=(B, S // row_tile, Dout // col_tile),
            in_specs=[
                pl.BlockSpec((1, row_tile, Din), lambda b, i, j: (b, i, 0)),
                pl.BlockSpec((Din, col_tile), lambda b, i, j: (0, j)),
                pl.BlockSpec((1, col_tile), lambda b, i, j: (0, j)),
            ],
            out_specs=pl.BlockSpec((1, row_tile, col_tile),
                                   lambda b, i, j: (b, i, j)),
        ),
        compiler_params=pltpu.CompilerParams(
            dimension_semantics=("parallel", "parallel", "parallel")),
    )(x, w, b)


# ---------------------------------------------------------------------------
# Stage 2: flash attention with fused head-merge + out_proj
# ---------------------------------------------------------------------------
def _flash_attn_kernel(q_ref, k_ref, v_ref, wo_ref, bo_ref, o_ref,
                       m_s, l_s, acc_s, out_s,
                       *, tq, tk, causal, kv_len):
    qi = pl.program_id(1)
    h = pl.program_id(2)
    ki = pl.program_id(3)
    n_h = pl.num_programs(2)
    n_kv = pl.num_programs(3)

    # ---- per (batch, q-block, head): reset the online-softmax state --------
    @pl.when(ki == 0)
    def _init_head():
        m_s[...] = jnp.full(m_s.shape, -jnp.inf, dtype=m_s.dtype)
        l_s[...] = jnp.zeros(l_s.shape, dtype=l_s.dtype)
        acc_s[...] = jnp.zeros(acc_s.shape, dtype=acc_s.dtype)

    # ---- per (batch, q-block): reset the fused out-proj accumulator --------
    @pl.when((ki == 0) & (h == 0))
    def _init_out():
        out_s[...] = jnp.zeros(out_s.shape, dtype=out_s.dtype)

    # ---- one KV block: online-softmax update -------------------------------
    def _update():
        q = q_ref[0, 0]                      # (tq, dh) bf16, 1/sqrt(dh) folded in
        k = k_ref[0, 0]                      # (tk, dh) bf16
        v = v_ref[0, 0]                      # (tk, dh) bf16
        s = lax.dot_general(q, k, (((1,), (1,)), ((), ())),
                            preferred_element_type=jnp.float32)   # (tq, tk) f32

        if causal:
            # 2-D mask, built once per (q, kv) tile (not per head).
            q_pos = qi * tq + lax.broadcasted_iota(jnp.int32, (tq, tk), 0)
            k_pos = ki * tk + lax.broadcasted_iota(jnp.int32, (tq, tk), 1)
            s = jnp.where(k_pos > q_pos, jnp.float32(-1e30), s)
        elif kv_len is not None:
            # Sequence was padded: mask the padded keys (causal already covers
            # them for valid query rows, so only needed in the non-causal path).
            k_pos = ki * tk + lax.broadcasted_iota(jnp.int32, (tq, tk), 1)
            s = jnp.where(k_pos >= kv_len, jnp.float32(-1e30), s)

        m_prev = m_s[...]
        m_new = jnp.maximum(m_prev, jnp.max(s, axis=-1, keepdims=True))
        alpha = jnp.exp(m_prev - m_new)
        p = jnp.exp(s - m_new)                                    # (tq, tk) f32
        l_s[...] = alpha * l_s[...] + jnp.sum(p, axis=-1, keepdims=True)
        acc_s[...] = alpha * acc_s[...] + jnp.dot(
            p.astype(jnp.bfloat16), v, preferred_element_type=jnp.float32)
        m_s[...] = m_new

    if causal:
        # Fully-future KV tiles: skip compute (their HBM fetch is also elided
        # because the kv index_map clamps them onto the diagonal block).
        @pl.when(ki * tk < (qi + 1) * tq)
        def _maybe_update():
            _update()
    else:
        _update()

    # ---- per-head finalize: normalize, fold head-merge into out_proj -------
    @pl.when(ki == n_kv - 1)
    def _finalize_head():
        attn = acc_s[...] * pl.reciprocal(l_s[...], approx=True)  # (tq, dh) f32
        out_s[...] += jnp.dot(attn.astype(jnp.bfloat16), wo_ref[0],
                              preferred_element_type=jnp.float32)  # (tq, D)

    # ---- last head: add bias and emit the lane-dense (tq, D) output tile ---
    @pl.when((ki == n_kv - 1) & (h == n_h - 1))
    def _write():
        o_ref[0] = (out_s[...] + bo_ref[...]).astype(o_ref.dtype)


# ---------------------------------------------------------------------------
# Wrapper
# ---------------------------------------------------------------------------
def _round_up(x, m):
    return ((x + m - 1) // m) * m


def _choose_seq_tile(S, cap):
    """Tile for the sequence axis: prefer multiples of 128, else 8; pad S instead
    of falling back to a giant tile."""
    if S <= cap:
        return _round_up(S, 8)
    t = (cap // 128) * 128
    if t == 0:
        t = max((cap // 8) * 8, 8)
    return t


def _pick_divisor(n, cap):
    """Largest divisor of n that is <= cap, preferring multiples of 128, then 8."""
    cap = min(cap, n)
    for step in (128, 8):
        t = cap - cap % step
        while t >= step:
            if n % t == 0:
                return t
            t -= step
    return n


def self_attention(x, w_in, b_in, w_out, b_out, *, n_heads,
                   causal_mask=False, q_block=256, kv_block=256):
    """x: (B, S, D) f32. w_in: (D, 3D), b_in: (3D,), w_out: (D, D), b_out: (D,).
    Weights are stored as (in_features, out_features) == torch Linear weight.T."""
    B, S, D = x.shape
    assert D % n_heads == 0
    dh = D // n_heads

    # TODO(synk): per-generation tile sweep — v6e/v5e (128 MiB VMEM) tolerate
    # larger q_block/kv_block; v7x (64 MiB) should keep these defaults.
    tq = _choose_seq_tile(S, q_block)
    tk = _choose_seq_tile(S, kv_block)
    s_pad = _round_up(S, math.lcm(tq, tk))
    n_q, n_kv = s_pad // tq, s_pad // tk
    padded = s_pad != S

    # Fold 1/sqrt(d_head) into the Q projection (mask uses a large negative
    # constant, so masking before/after the scale is equivalent).
    scale = 1.0 / math.sqrt(dh)
    w_in_s = jnp.concatenate([w_in[:, :D] * scale, w_in[:, D:]], axis=1)
    b_in_s = jnp.concatenate([b_in[:D] * scale, b_in[D:]])

    x_bf = x.astype(jnp.bfloat16)
    if padded:
        x_bf = jnp.pad(x_bf, ((0, 0), (0, s_pad - S), (0, 0)))

    # ---- Stage 1: QKV projection, computed once at full MXU width ----------
    col_tile = _pick_divisor(3 * D, 1024)
    qkv = _linear(x_bf, w_in_s.astype(jnp.bfloat16),
                  b_in_s.reshape(1, 3 * D).astype(jnp.float32),
                  row_tile=tq, col_tile=col_tile,
                  out_dtype=jnp.bfloat16)                       # (B, s_pad, 3D)

    q, k, v = jnp.split(qkv, 3, axis=-1)
    to_heads = lambda t: t.reshape(B, s_pad, n_heads, dh).transpose(0, 2, 1, 3)
    q, k, v = to_heads(q), to_heads(k), to_heads(v)             # (B, H, s_pad, dh)

    wo_h = w_out.reshape(n_heads, dh, D).astype(jnp.bfloat16)   # (H, dh, D)
    bo = b_out.reshape(1, D).astype(jnp.float32)

    # ---- Stage 2: flash attention + fused head-merge / out_proj ------------
    def q_map(b, qi, h, ki):
        return (b, h, qi, 0)

    def kv_map(b, qi, h, ki):
        if causal_mask:
            # Clamp fully-future KV tiles onto the diagonal band; the repeated
            # block index means Pallas skips the (wasted) HBM fetch for them.
            ki = jnp.minimum(ki, ((qi + 1) * tq - 1) // tk)
        return (b, h, ki, 0)

    kernel = functools.partial(
        _flash_attn_kernel, tq=tq, tk=tk, causal=causal_mask,
        kv_len=S if (padded and not causal_mask) else None)

    out = pl.pallas_call(
        kernel,
        out_shape=jax.ShapeDtypeStruct((B, s_pad, D), x.dtype),
        grid_spec=pltpu.PrefetchScalarGridSpec(
            num_scalar_prefetch=0,
            grid=(B, n_q, n_heads, n_kv),
            in_specs=[
                pl.BlockSpec((1, 1, tq, dh), q_map),                       # Q
                pl.BlockSpec((1, 1, tk, dh), kv_map),                      # K
                pl.BlockSpec((1, 1, tk, dh), kv_map),                      # V
                pl.BlockSpec((1, dh, D), lambda b, qi, h, ki: (h, 0, 0)),  # Wo[h]
                pl.BlockSpec((1, D), lambda b, qi, h, ki: (0, 0)),         # bo
            ],
            out_specs=pl.BlockSpec((1, tq, D), lambda b, qi, h, ki: (b, qi, 0)),
            scratch_shapes=[
                pltpu.VMEM((tq, 1), jnp.float32),    # running max m
                pltpu.VMEM((tq, 1), jnp.float32),    # running sum l
                pltpu.VMEM((tq, dh), jnp.float32),   # per-head PV accumulator
                pltpu.VMEM((tq, D), jnp.float32),    # fused out_proj accumulator
            ],
        ),
        compiler_params=pltpu.CompilerParams(
            dimension_semantics=("parallel", "parallel", "arbitrary", "arbitrary"),
            vmem_limit_bytes=48 * 1024 * 1024,   # safe on v5e/v6e/v7x; footprint is small
        ),
    )(q, k, v, wo_h, bo)

    return out[:, :S, :] if padded else out


# ---------------------------------------------------------------------------
# Pure-JAX f32 reference (mirrors the PyTorch forward exactly)
# ---------------------------------------------------------------------------
def self_attention_ref(x, w_in, b_in, w_out, b_out, *, n_heads, causal_mask=False):
    B, S, D = x.shape
    dh = D // n_heads
    qkv = x @ w_in + b_in
    q, k, v = jnp.split(qkv, 3, axis=-1)
    q = q.reshape(B, S, n_heads, dh).transpose(0, 2, 1, 3)
    k = k.reshape(B, S, n_heads, dh).transpose(0, 2, 1, 3)
    v = v.reshape(B, S, n_heads, dh).transpose(0, 2, 1, 3)
    w = jnp.einsum('bhqd,bhkd->bhqk', q, k)
    if causal_mask:
        row = lax.broadcasted_iota(jnp.int32, (S, S), 0)
        col = lax.broadcasted_iota(jnp.int32, (S, S), 1)
        w = jnp.where(col > row, -jnp.inf, w)
    w = w / math.sqrt(dh)
    w = jax.nn.softmax(w, axis=-1)
    o = jnp.einsum('bhqk,bhkd->bhqd', w, v)
    o = o.transpose(0, 2, 1, 3).reshape(B, S, D)
    return o @ w_out + b_out


if __name__ == "__main__":
    # Small shapes consistent with the module: B=2, S=8, D=32, 4 heads (d_head=8).
    B, S, D, H = 2, 8, 32, 4

    key = jax.random.PRNGKey(0)
    kx, kw1, kb1, kw2, kb2 = jax.random.split(key, 5)

    x = jax.random.normal(kx, (B, S, D), dtype=jnp.float32)

    # nn.Linear-style init, stored pre-transposed as (in_features, out_features).
    bound = 1.0 / math.sqrt(D)
    w_in = jax.random.uniform(kw1, (D, 3 * D), jnp.float32, -bound, bound)
    b_in = jax.random.uniform(kb1, (3 * D,), jnp.float32, -bound, bound)
    w_out = jax.random.uniform(kw2, (D, D), jnp.float32, -bound, bound)
    b_out = jax.random.uniform(kb2, (D,), jnp.float32, -bound, bound)

    # bf16 MXU operands vs f32 reference -> loose tolerance.
    TOL = dict(atol=2e-2, rtol=2e-2)

    for causal in (False, True):
        out = jax.block_until_ready(
            self_attention(x, w_in, b_in, w_out, b_out, n_heads=H,
                           causal_mask=causal))
        ref = self_attention_ref(x, w_in, b_in, w_out, b_out, n_heads=H,
                                 causal_mask=causal)
        assert jnp.allclose(out, ref, **TOL), f"mismatch vs reference (causal={causal})"

    # Multi-block flash path (grid = (1, 4, 4, 4)) incl. causal skip / DMA clamp.
    x2 = jax.random.normal(jax.random.PRNGKey(1), (1, 64, D), dtype=jnp.float32)
    for causal in (False, True):
        out2 = jax.block_until_ready(
            self_attention(x2, w_in, b_in, w_out, b_out, n_heads=H,
                           causal_mask=causal, q_block=16, kv_block=16))
        ref2 = self_attention_ref(x2, w_in, b_in, w_out, b_out, n_heads=H,
                                  causal_mask=causal)
        assert jnp.allclose(out2, ref2, **TOL), f"mismatch tiled (causal={causal})"

    print("KERNEL_OK")
</pallas_src>

<mosaic_0001>
module attributes {stable_mosaic.version = 11 : i64} {
  func.func @_linear_kernel(%arg0: i32, %arg1: i32, %arg2: i32, %arg3: memref<1x8x32xbf16, #tpu.memory_space<vmem>>, %arg4: memref<32x96xbf16, #tpu.memory_space<vmem>>, %arg5: memref<1x96xf32, #tpu.memory_space<vmem>>, %arg6: memref<1x8x96xbf16, #tpu.memory_space<vmem>>) attributes {dimension_semantics = [#tpu.dimension_semantics<parallel>, #tpu.dimension_semantics<parallel>, #tpu.dimension_semantics<parallel>], iteration_bounds = array<i64: 2, 1, 1>, scalar_prefetch = 0 : i64, scratch_operands = 0 : i64, tpu.core_type = #tpu.core_type<tc>, window_params = [{transform_indices = @transform_0, window_bounds = array<i64: 1, 8, 32>}, {transform_indices = @transform_1, window_bounds = array<i64: 32, 96>}, {transform_indices = @transform_2, window_bounds = array<i64: 1, 96>}, {transform_indices = @transform_3, window_bounds = array<i64: 1, 8, 96>}]} {
    %c0 = arith.constant 0 : index
    %c0_0 = arith.constant 0 : index
    %c0_1 = arith.constant 0 : index
    %0 = vector.load %arg3[%c0, %c0_0, %c0_1] : memref<1x8x32xbf16, #tpu.memory_space<vmem>>, vector<1x8x32xbf16>
    %1 = vector.shape_cast %0 : vector<1x8x32xbf16> to vector<8x32xbf16>
    %c0_2 = arith.constant 0 : index
    %c0_3 = arith.constant 0 : index
    %2 = vector.load %arg4[%c0_2, %c0_3] : memref<32x96xbf16, #tpu.memory_space<vmem>>, vector<32x96xbf16>
    %cst = arith.constant dense<0.000000e+00> : vector<8x96xf32>
    %3 = tpu.matmul %1, %2, %cst {dimension_numbers = #tpu.dot_dimension_numbers<[1], [0], [0], [1], [0, 0, 1, 1], [], []>} : vector<8x32xbf16>, vector<32x96xbf16>, vector<8x96xf32> -> vector<8x96xf32>
    %c0_4 = arith.constant 0 : index
    %c0_5 = arith.constant 0 : index
    %4 = vector.load %arg5[%c0_4, %c0_5] : memref<1x96xf32, #tpu.memory_space<vmem>>, vector<1x96xf32>
    %5 = vector.broadcast %4 : vector<1x96xf32> to vector<8x96xf32>
    %6 = arith.addf %3, %5 : vector<8x96xf32>
    %7 = arith.truncf %6 : vector<8x96xf32> to vector<8x96xbf16>
    %c0_6 = arith.constant 0 : index
    %c0_7 = arith.constant 0 : index
    %c0_8 = arith.constant 0 : index
    %8 = vector.load %arg6[%c0_6, %c0_7, %c0_8] : memref<1x8x96xbf16, #tpu.memory_space<vmem>>, vector<1x8x96xbf16>
    %9 = vector.shape_cast %8 : vector<1x8x96xbf16> to vector<8x96xbf16>
    %10 = vector.shape_cast %7 : vector<8x96xbf16> to vector<1x8x96xbf16>
    tpu.vector_store %arg6[%c0_6, %c0_7, %c0_8], %10 {strides = array<i32>} : memref<1x8x96xbf16, #tpu.memory_space<vmem>>, vector<1x8x96xbf16>,
    return
  }
  func.func @transform_0(%arg0: i32, %arg1: i32, %arg2: i32) -> (i32, i32, i32) {
    %c0_i32 = arith.constant 0 : i32
    %c0_i32_0 = arith.constant 0 : i32
    return %arg0, %arg1, %c0_i32 : i32, i32, i32
  }
  func.func @transform_1(%arg0: i32, %arg1: i32, %arg2: i32) -> (i32, i32) {
    %c0_i32 = arith.constant 0 : i32
    %c0_i32_0 = arith.constant 0 : i32
    return %c0_i32, %arg2 : i32, i32
  }
  func.func @transform_2(%arg0: i32, %arg1: i32, %arg2: i32) -> (i32, i32) {
    %c0_i32 = arith.constant 0 : i32
    %c0_i32_0 = arith.constant 0 : i32
    return %c0_i32, %arg2 : i32, i32
  }
  func.func @transform_3(%arg0: i32, %arg1: i32, %arg2: i32) -> (i32, i32, i32) {
    %c0_i32 = arith.constant 0 : i32
    return %arg0, %arg1, %arg2 : i32, i32, i32
  }
}

</mosaic_0001>

<llo_original>
// kernel: tpu_custom_call.1
$region0: #{tpu_custom_call.1}
  #allocation0 [shape = 'u32[]', space=smem, size = 0x4, offset = 0x4, fixed_abs, tag = 'smem constant byte address 0x4 - core index']
  #allocation1 [shape = 'u32[144,128]{1,0:T(1,128)}', space=vmem, size = 0x12000, scoped, tag = 'internal scratch']
  %s0 = inlined_call_operand.hbm [shape: bf16[2,8,32], index: 0, kind: input, shape index: {}]
  %s1 = inlined_call_operand.hbm [shape: bf16[32,96], index: 1, kind: input, shape index: {}]
  %s2 = inlined_call_operand.vmem [shape: f32[1,96], index: 2, kind: input, shape index: {}]
  %s3 = inlined_call_operand.hbm [shape: bf16[2,8,96], index: 3, kind: output, shape index: {}]
  %s4 = sld [smem:[#allocation0]]
  $region53: #{tpu_custom_call.1} parent=0
    _
  %s6 = ssub.s32 1, %s4
  %s7 = scalar_select 0, %s6, %s4
  $region1: #{tpu_custom_call.1} parent=0
    #allocation2 [shape = 'u8[4096]{0}', space=vmem, size = 0x1000, scoped, tag = 'input window, operand 0']
    #allocation3 [shape = 's32[2]{0}', space=sflag, size = 0x8, scoped, tag = 'scoped memory for tpu_custom_call.1']
    #allocation4 [shape = 's32[2]{0}', space=sflag, size = 0x8, scoped, tag = 'scoped memory for tpu_custom_call.1']
    #allocation5 [shape = 'u8[8192]{0}', space=vmem, size = 0x2000, scoped, tag = 'input window, operand 1, single buffered']
    #allocation6 [shape = 's32[1]{0}', space=sflag, size = 0x4, scoped, tag = 'scoped memory for tpu_custom_call.1']
    #allocation7 [shape = 'u8[4096]{0}', space=vmem, size = 0x1000, scoped, tag = 'output window, operand 0']
    %8 = vsyncpa [#allocation3], 0
    %s9 = scalar_lea.sflag [#allocation3], 1
    %10 = vsyncpa %s9, 0
    %11 = vsyncpa [#allocation6], 0
    %12 = vsyncpa [#allocation4], 0
    %s13 = scalar_lea.sflag [#allocation4], 1
    %14 = vsyncpa %s13, 0
    loop: start=0, step=1, limit=4
    $region2: #{tpu_custom_call.1} parent=1 // loop_pre_header
      _
    $region3: #{tpu_custom_call.1} parent=1 // loop_header
      %s16 = sphi 0, %s20
      %p17 = scmp.ge.s32.totalorder %s16, 4
      %s23 = sphi 0, %s42
      %s24 = sphi 0, %s38
      %s25 = sphi 0, %s34
      %s26 = sphi 0, %s23
      %s27 = sphi 0, %s24
      %s28 = sphi 0, %s25
      %s29 = sphi 0, %s26
      %s30 = sphi 0, %s27
      %s31 = sphi 0, %s28
      %s47 = sphi 0, %s49
      %s50 = sphi 0, %s47
      %s51 = sphi 0, %s50
      %s67 = sphi 0, %s51
      %s73 = sphi 0, %s75
      %s76 = sphi 0, %s73
      %s77 = sphi 0, %s76
      %s93 = sphi 0, %s77
      %s99 = sphi 0, %s101
      %s102 = sphi 0, %s99
      %s103 = sphi 0, %s102
      %s119 = sphi 0, %s103
      %s129 = sphi 0, %s131
      %s132 = sphi 0, %s129
      %s133 = sphi 0, %s132
      %s149 = sphi 0, %s133
    $region4: #{tpu_custom_call.1} parent=1 // loop_header_branch
      %19 = sbr.rel (%p17) target = $region8
    $region5: #{tpu_custom_call.1} parent=1 // loop_body
      %s21 = ssub.s32 %s16, 1
      %s22 = ssub.s32 %s16, 2
      %s32 = sadd.s32 1, %s25
      %p33 = scmp.ge.s32.totalorder %s32, 1
      %s34 = scalar_select %p33, 0, %s32
      %s35 = sadd.s32 1, %s24
      %s36 = scalar_select %p33, %s35, %s24
      %p37 = scmp.ge.s32.totalorder %s36, 1
      %s38 = scalar_select %p37, 0, %s36
      %s39 = sadd.s32 1, %s23
      %s40 = scalar_select %p37, %s39, %s23
      %p41 = scmp.ge.s32.totalorder %s40, 2
      %s42 = scalar_select %p41, 0, %s40
      %s43 = ssub.s32 %s23, %s42
      %s44 = ssub.s32 %s24, %s38
      %s45 = sor.u32 %s43, %s44
      %p46 = scmp.eq.s32.totalorder %s45, 0
      %s48 = sadd.s32 %s47, 1
      %s49 = scalar_select %p46, %s47, %s48
      %p52 = pneg %p46
      %p53 = scmp.eq.s32.totalorder %s16, 1
      %p54 = por %p52, %p53
      %p55 = scmp.ne.s32.totalorder %s47, %s50
      %p56 = scmp.eq.s32.totalorder %s16, 0
      %p57 = por %p55, %p56
      %p58 = scmp.ne.s32.totalorder %s47, %s50
      %p59 = scmp.eq.s32.totalorder %s21, 1
      %p60 = por %p58, %p59
      %p61 = scmp.ne.s32.totalorder %s50, %s51
      %p62 = scmp.eq.s32.totalorder %s21, 0
      %p63 = por %p61, %p62
      %p64 = scmp.ne.s32.totalorder %s50, %s51
      %p65 = scmp.eq.s32.totalorder %s22, 1
      %p66 = por %p64, %p65
      %p68 = scmp.ne.s32.totalorder %s51, %s67
      %p69 = scmp.eq.s32.totalorder %s22, 0
      %p70 = por %p68, %p69
      %s71 = ssub.s32 %s25, %s34
      %p72 = scmp.eq.s32.totalorder %s71, 0
      %s74 = sadd.s32 %s73, 1
      %s75 = scalar_select %p72, %s73, %s74
      %p78 = pneg %p72
      %p79 = scmp.eq.s32.totalorder %s16, 1
      %p80 = por %p78, %p79
      %p81 = scmp.ne.s32.totalorder %s73, %s76
      %p82 = scmp.eq.s32.totalorder %s16, 0
      %p83 = por %p81, %p82
      %p84 = scmp.ne.s32.totalorder %s73, %s76
      %p85 = scmp.eq.s32.totalorder %s21, 1
      %p86 = por %p84, %p85
      %p87 = scmp.ne.s32.totalorder %s76, %s77
      %p88 = scmp.eq.s32.totalorder %s21, 0
      %p89 = por %p87, %p88
      %p90 = scmp.ne.s32.totalorder %s76, %s77
      %p91 = scmp.eq.s32.totalorder %s22, 1
      %p92 = por %p90, %p91
      %p94 = scmp.ne.s32.totalorder %s77, %s93
      %p95 = scmp.eq.s32.totalorder %s22, 0
      %p96 = por %p94, %p95
      %s97 = ssub.s32 %s25, %s34
      %p98 = scmp.eq.s32.totalorder %s97, 0
      %s100 = sadd.s32 %s99, 1
      %s101 = scalar_select %p98, %s99, %s100
      %p104 = pneg %p98
      %p105 = scmp.eq.s32.totalorder %s16, 1
      %p106 = por %p104, %p105
      %p107 = scmp.ne.s32.totalorder %s99, %s102
      %p108 = scmp.eq.s32.totalorder %s16, 0
      %p109 = por %p107, %p108
      %p110 = scmp.ne.s32.totalorder %s99, %s102
      %p111 = scmp.eq.s32.totalorder %s21, 1
      %p112 = por %p110, %p111
      %p113 = scmp.ne.s32.totalorder %s102, %s103
      %p114 = scmp.eq.s32.totalorder %s21, 0
      %p115 = por %p113, %p114
      %p116 = scmp.ne.s32.totalorder %s102, %s103
      %p117 = scmp.eq.s32.totalorder %s22, 1
      %p118 = por %p116, %p117
      %p120 = scmp.ne.s32.totalorder %s103, %s119
      %p121 = scmp.eq.s32.totalorder %s22, 0
      %p122 = por %p120, %p121
      %s123 = ssub.s32 %s23, %s42
      %s124 = ssub.s32 %s24, %s38
      %s125 = sor.u32 %s123, %s124
      %s126 = ssub.s32 %s25, %s34
      %s127 = sor.u32 %s125, %s126
      %p128 = scmp.eq.s32.totalorder %s127, 0
      %s130 = sadd.s32 %s129, 1
      %s131 = scalar_select %p128, %s129, %s130
      %p134 = pneg %p128
      %p135 = scmp.eq.s32.totalorder %s16, 1
      %p136 = por %p134, %p135
      %p137 = scmp.ne.s32.totalorder %s129, %s132
      %p138 = scmp.eq.s32.totalorder %s16, 0
      %p139 = por %p137, %p138
      %p140 = scmp.ne.s32.totalorder %s129, %s132
      %p141 = scmp.eq.s32.totalorder %s21, 1
      %p142 = por %p140, %p141
      %p143 = scmp.ne.s32.totalorder %s132, %s133
      %p144 = scmp.eq.s32.totalorder %s21, 0
      %p145 = por %p143, %p144
      %p146 = scmp.ne.s32.totalorder %s132, %s133
      %p147 = scmp.eq.s32.totalorder %s22, 1
      %p148 = por %p146, %p147
      %p150 = scmp.ne.s32.totalorder %s133, %s149
      %p151 = scmp.eq.s32.totalorder %s22, 0
      %p152 = por %p150, %p151
      %p153 = scmp.le.s32.totalorder 1, %s16
      %p154 = scmp.lt.s32.totalorder %s16, 3
      %p155 = pnand %p153, %p154
      %p156 = pneg %p155
      // Predicated region
      $region9: #{tpu_custom_call.1} parent=5 // pred_check
        _
      $region10: #{tpu_custom_call.1} parent=5 // pred_check_branch
        %158 = sbr.rel (%p155) target = $region12
      $region11: #{tpu_custom_call.1} parent=5 // pred_region
        %s159 = ssub.s32 %s16, 1
        // Predicated region
        $region13: #{tpu_custom_call.1} parent=11 // pred_check
          %p160 = pneg %p89
        $region14: #{tpu_custom_call.1} parent=11 // pred_check_branch
          %162 = sbr.rel (%p160) target = $region16
        $region15: #{tpu_custom_call.1} parent=11 // pred_region
          %s164 = ssub.s32 256, 256
          %165 = vsyncadd [#allocation6], %s164
          %s166 = smul.addr %s28, 64
          %s167 = scalar_lea.hbm %s1, %s166
          %s168 = sshll.u32 [#allocation5], 4
          %s169 = int_to_ptr.vmem [resolvable:$true] %s168
          %174 = dma.hbm_to_vmem [thread:$0]  %s167, 256, %s169, [#allocation6], 64, 64, 4
        $region16: #{tpu_custom_call.1} parent=11 // pred_fallthru
          _
        // Predicated region
        $region17: #{tpu_custom_call.1} parent=11 // pred_check
          %p175 = pneg %p115
        $region18: #{tpu_custom_call.1} parent=11 // pred_check_branch
          %177 = sbr.rel (%p175) target = $region20
        $region19: #{tpu_custom_call.1} parent=11 // pred_region
          %p178 = scmp.lt.s32.totalorder %s28, 0
          %s179 = scalar_select %p178, %s28, 0
          %s180 = scalar_lea.vmem %s2, %s179
        $region20: #{tpu_custom_call.1} parent=11 // pred_fallthru
          _
      $region12: #{tpu_custom_call.1} parent=5 // pred_fallthru
        _
      %p181 = scmp.lt.s32.totalorder %s16, 2
      // Predicated region
      $region21: #{tpu_custom_call.1} parent=5 // pred_check
        %p182 = pneg %p181
      $region22: #{tpu_custom_call.1} parent=5 // pred_check_branch
        %184 = sbr.rel (%p182) target = $region24
      $region23: #{tpu_custom_call.1} parent=5 // pred_region
        // Predicated region
        $region25: #{tpu_custom_call.1} parent=23 // pred_check
          %p185 = pneg %p57
        $region26: #{tpu_custom_call.1} parent=23 // pred_check_branch
          %187 = sbr.rel (%p185) target = $region28
        $region27: #{tpu_custom_call.1} parent=23 // pred_region
          %s188 = sand.u32 %s47, 1
          %s189 = scalar_lea.sflag [#allocation3], %s188
          %s190 = sand.u32 %s47, 1
          %s191 = smul.addr %s190, 4
          %s192 = scalar_lea.vmem [#allocation2], %s191
          %s194 = ssub.s32 64, 64
          %195 = vsyncadd %s189, %s194
          %s196 = sadd.s32 %s24, %s23
          %s197 = smul.addr %s196, 64
          %s198 = scalar_lea.hbm %s0, %s197
          %s200 = sshll.u32 %s192, 4
          %s201 = int_to_ptr.vmem [resolvable:$true] %s200
          %203 = dma.hbm_to_vmem [thread:$0]  %s198, 64, %s201, %s189
        $region28: #{tpu_custom_call.1} parent=23 // pred_fallthru
          _
      $region24: #{tpu_custom_call.1} parent=5 // pred_fallthru
        _
      %p204 = scmp.le.s32.totalorder 1, %s16
      %p205 = scmp.lt.s32.totalorder %s16, 3
      %p206 = pnand %p204, %p205
      %p207 = pneg %p206
      // Predicated region
      $region29: #{tpu_custom_call.1} parent=5 // pred_check
        _
      $region30: #{tpu_custom_call.1} parent=5 // pred_check_branch
        %209 = sbr.rel (%p206) target = $region32
      $region31: #{tpu_custom_call.1} parent=5 // pred_region
        %s210 = ssub.s32 %s16, 1
        %s211 = sand.u32 %s50, 1
        %s212 = scalar_lea.sflag [#allocation3], %s211
        %s213 = sand.u32 %s50, 1
        %s214 = smul.addr %s213, 4
        %s215 = scalar_lea.vmem [#allocation2], %s214
        // Predicated region
        $region33: #{tpu_custom_call.1} parent=31 // pred_check
          %p216 = pneg %p63
        $region34: #{tpu_custom_call.1} parent=31 // pred_check_branch
          %218 = sbr.rel (%p216) target = $region36
        $region35: #{tpu_custom_call.1} parent=31 // pred_region
          %219 = dma.done %s212, 64
        $region36: #{tpu_custom_call.1} parent=31 // pred_fallthru
          _
        // Predicated region
        $region37: #{tpu_custom_call.1} parent=31 // pred_check
          %p220 = pneg %p89
        $region38: #{tpu_custom_call.1} parent=31 // pred_check_branch
          %222 = sbr.rel (%p220) target = $region40
        $region39: #{tpu_custom_call.1} parent=31 // pred_region
          %223 = dma.done [#allocation6], 256
        $region40: #{tpu_custom_call.1} parent=31 // pred_fallthru
          _
        %s224 = sand.u32 %s50, 1
        %s225 = scalar_lea.sflag [#allocation3], %s224
        %s226 = sand.u32 %s50, 1
        %s227 = smul.addr %s226, 4
        %s228 = scalar_lea.vmem [#allocation2], %s227
        %p229 = pneg %p63
        %p230 = pneg %p60
        %p231 = pneg %p89
        %p232 = pneg %p86
        %p233 = scmp.lt.s32.totalorder %s28, 0
        %s234 = scalar_select %p233, %s28, 0
        %s235 = scalar_lea.vmem %s2, %s234
        %p236 = pneg %p115
        %p237 = pneg %p112
        %p238 = pneg %p145
        %p239 = pneg %p142
        %s240 = sand.u32 %s132, 1
        %s241 = scalar_lea.sflag [#allocation4], %s240
        %s242 = sand.u32 %s132, 1
        %s243 = smul.addr %s242, 4
        %s244 = scalar_lea.vmem [#allocation7], %s243
        %p245 = scmp.lt.s32.totalorder %s28, 0
        %s246 = scalar_select %p245, %s28, 0
        %s247 = scalar_lea.vmem %s2, %s246
        %v249 = vld [vmem:[%s215] sm:$0xf]
        %v250 = vld [vmem:[#allocation5] sm:$0xf]
        %v251 = vld [vmem:[#allocation5 + $0x4] sm:$0xf]
        %v252 = vld [vmem:[#allocation5 + $0x8] sm:$0xf]
        %v253 = vld [vmem:[#allocation5 + $0xc] sm:$0xf]
        %v254 = vld [vmem:[%s247] sm:$0x1]
        %v256 = vlaneseq
        %v257 = vshrl.u32 %v256, 7
        %v258 = vsub.s32 0, %v257
        %v259 = vrot.slane %v254, %v258
        %v265 = vunpack.c.l.b16 %v250
        %v266 = vunpack.c.l.b16 %v251
        %v267 = vunpack.c.l.b16 %v252
        %v268 = vunpack.c.l.b16 %v253
        %v269 = vpack.c.b16 %v266, %v265
        %v270 = vpack.c.b16 %v268, %v267
        %vm273 = vcmask 261120
        %v275 = vsel %vm273, %v249, 0
        %277 = vmatprep.subr.bf16.mxu0 0
        %278 = vmatpush1.bf16.msra.mxu0 %v269
        %279 = vmatprep.subr.bf16.mxu0 0
        %280 = vmatpush1.bf16.msra.mxu0 %v270
        %281 = vmatprep.subr.bf16.mxu0 0
        %282 = vmatpush1.bf16.msra.mxu0 0
        %283 = vmatprep.subr.bf16.mxu0 0
        %284 = vmatpush1.bf16.msra.mxu0 0
        %285 = vmatprep.subr.bf16.mxu0 0
        %286 = vmatpush1.bf16.msra.mxu0 0
        %287 = vmatprep.subr.bf16.mxu0 0
        %288 = vmatpush1.bf16.msra.mxu0 0
        %289 = vmatprep.subr.bf16.mxu0 0
        %290 = vmatpush1.bf16.msra.mxu0 0
        %291 = vmatprep.subr.bf16.mxu0 0
        %292 = vmatpush1.bf16.msra.mxu0 0
        %293 = vmatprep.subr.bf16.mxu0 0
        %294 = vmatpush1.bf16.msra.mxu0 0
        %295 = vmatprep.subr.bf16.mxu0 0
        %296 = vmatpush1.bf16.msra.mxu0 0
        %297 = vmatprep.subr.bf16.mxu0 0
        %298 = vmatpush1.bf16.msra.mxu0 0
        %299 = vmatprep.subr.bf16.mxu0 0
        %300 = vmatpush1.bf16.msra.mxu0 0
        %301 = vmatprep.subr.bf16.mxu0 0
        %302 = vmatpush1.bf16.msra.mxu0 0
        %303 = vmatprep.subr.bf16.mxu0 0
        %304 = vmatpush1.bf16.msra.mxu0 0
        %305 = vmatprep.subr.bf16.mxu0 0
        %306 = vmatpush1.bf16.msra.mxu0 0
        %307 = vmatprep.subr.bf16.mxu0 0
        %308 = vmatpush1.bf16.msra.mxu0 0
        %309 = vmatprep.mubr.bf16.mxu0 0
        %310 = vmatmul.mubr.bf16.gmra.mrb[0].mxu0 %v275
        %v311 = vpop.f32.mrb[0].mxu0
        %v312 = vadd.f32 %v259, %v311
        %v313 = vpop.f32.mrb[0].mxu0
        %v314 = vpop.f32.mrb[0].mxu0
        %v315 = vpop.f32.mrb[0].mxu0
        %316 = vdwg.mxu0
        %v317 = vpack.c.bf16 %v312, %v312
        %vm318 = vcmask 781312
        %319 = vst.msk [vmem:[%s244] sm:$0xf] %vm318, %v317
        %s320 = sand.u32 %s132, 1
        %s321 = scalar_lea.sflag [#allocation4], %s320
        %s322 = sand.u32 %s132, 1
        %s323 = smul.addr %s322, 4
        %s324 = scalar_lea.vmem [#allocation7], %s323
        // Predicated region
        $region41: #{tpu_custom_call.1} parent=31 // pred_check
          %p325 = pneg %p142
        $region42: #{tpu_custom_call.1} parent=31 // pred_check_branch
          %327 = sbr.rel (%p325) target = $region44
        $region43: #{tpu_custom_call.1} parent=31 // pred_region
          %s329 = ssub.s32 64, 64
          %330 = vsyncadd %s321, %s329
          %s331 = sadd.s32 %s28, %s27
          %s332 = sadd.s32 %s331, %s26
          %s333 = smul.addr %s332, 64
          %s334 = scalar_lea.hbm %s3, %s333
          %s336 = sshll.u32 %s324, 4
          %s337 = int_to_ptr.vmem [resolvable:$true] %s336
          %339 = dma.vmem_to_hbm [thread:$0]  %s337, 64, %s334, %s321
        $region44: #{tpu_custom_call.1} parent=31 // pred_fallthru
          _
      $region32: #{tpu_custom_call.1} parent=5 // pred_fallthru
        _
      %p340 = scmp.le.s32.totalorder 2, %s16
      // Predicated region
      $region45: #{tpu_custom_call.1} parent=5 // pred_check
        %p341 = pneg %p340
      $region46: #{tpu_custom_call.1} parent=5 // pred_check_branch
        %343 = sbr.rel (%p341) target = $region48
      $region47: #{tpu_custom_call.1} parent=5 // pred_region
        %s344 = ssub.s32 %s16, 2
        // Predicated region
        $region49: #{tpu_custom_call.1} parent=47 // pred_check
          %p345 = pneg %p148
        $region50: #{tpu_custom_call.1} parent=47 // pred_check_branch
          %347 = sbr.rel (%p345) target = $region52
        $region51: #{tpu_custom_call.1} parent=47 // pred_region
          %s348 = sand.u32 %s133, 1
          %s349 = scalar_lea.sflag [#allocation4], %s348
          %s350 = sand.u32 %s133, 1
          %s351 = smul.addr %s350, 4
          %s352 = scalar_lea.vmem [#allocation7], %s351
          %353 = dma.done %s349, 64
        $region52: #{tpu_custom_call.1} parent=47 // pred_fallthru
          _
      $region48: #{tpu_custom_call.1} parent=5 // pred_fallthru
        _
    $region6: #{tpu_custom_call.1} parent=1 // loop_footer
      %s20 = sadd.s32 1, %s16
    $region7: #{tpu_custom_call.1} parent=1 // loop_footer_branch
      %15 = sbr.rel target = $region3
    $region8: #{tpu_custom_call.1} parent=1 // loop_exit
      _
    %354 = vsyncpa [#allocation3], 1
    %s355 = scalar_lea.sflag [#allocation3], 1
    %356 = vsyncpa %s355, 1
    %357 = vsyncpa [#allocation6], 1
    %358 = vsyncpa [#allocation4], 1
    %s359 = scalar_lea.sflag [#allocation4], 1
    %360 = vsyncpa %s359, 1

</llo_original>
